<compile_context>
chip_gen: v7x
topology: tpu7x:2x2x1
jax: 0.10.0
libtpu: 0.0.40
codegen_flags: <defaults>
</compile_context>

<pallas_src>
import jax
import jax.numpy as jnp
from jax.experimental import pallas as pl
from jax.experimental.pallas import tpu as pltpu


# ------------------------------- kernel --------------------------------------

def _resnet_block_kernel(x_ref, t1_ref, b1_ref, t2_ref, b2_ref, o_ref, col_scr):
    # x_ref   : (1, H/2, 2*W*C) f32   input, two spatial rows packed per vector row
    # t?_ref  : (4*W*C, 2*W*C)  bf16  K-stacked block-Toeplitz conv weights
    #                                 (W-reflection folded into boundary taps)
    # b?_ref  : (1, 2*W*C)      f32   per-lane bias (channel bias tiled over 2*W)
    # o_ref   : (1, H/2, 2*W*C) f32
    # col_scr : (H/2, 4*W*C)    f32   im2col scratch, reused by both convs
    H2, L = o_ref.shape[1], o_ref.shape[2]          # L = 2*W*C
    WC = L // 2

    def im2col(src):
        # src: (H/2, 2*W*C) packed rows.  Build concat(padded[2r+0 .. 2r+3]) per
        # packed row r, where padded[] is the H-reflection-padded image (the W
        # reflection is already folded into the weight slabs).
        # blocks 1,2 (padded rows 2r+1, 2r+2) == the packed row itself.
        col_scr[:, WC:3 * WC] = src
        # block 0 (padded row 2r): x[2r-1] = odd half of previous packed row;
        # row 0 reflects to x[1].
        col_scr[0:1, 0:WC] = src[0:1, WC:2 * WC]
        col_scr[1:H2, 0:WC] = src[0:H2 - 1, WC:2 * WC]
        # block 3 (padded row 2r+3): x[2r+2] = even half of next packed row;
        # last row reflects to x[H-2].
        col_scr[0:H2 - 1, 3 * WC:4 * WC] = src[1:H2, 0:WC]
        col_scr[H2 - 1:H2, 3 * WC:4 * WC] = src[H2 - 1:H2, 0:WC]

    def conv(t_ref, b_ref):
        # single MXU matmul per conv: (H/2, 4WC) @ (4WC, 2WC), f32 accumulation.
        return jnp.dot(col_scr[...].astype(jnp.bfloat16), t_ref[...],
                       preferred_element_type=jnp.float32) + b_ref[...]

    x = x_ref[0]                                    # resident residual tile (f32)
    im2col(x)
    h = jnp.maximum(conv(t1_ref, b1_ref), 0.0)      # conv1 + bias + ReLU (f32)
    im2col(h)                                       # scratch reused for conv2
    o_ref[0] = (conv(t2_ref, b2_ref) + x).astype(o_ref.dtype)


# ------------------------- weight repack (wrapper side) -----------------------

def _reflect_select(W, dw):
    """(W, W) selection matrix S: S[i, j] = 1 iff input column i feeds output
    column j at horizontal tap dw under ReflectionPad2d(1)."""
    if dw == 1:
        return jnp.eye(W, dtype=jnp.float32)
    if dw == 0:
        return jnp.eye(W, k=1, dtype=jnp.float32).at[1, 0].set(1.0)
    return jnp.eye(W, k=-1, dtype=jnp.float32).at[W - 2, W - 1].set(1.0)


def _conv_slab(w, W):
    """w: (3, 3, Cin, Cout) HWIO  ->  (4*W*Cin, 2*W*Cout) bf16 stacked slab.

    Per-dh block-Toeplitz matrices T[dh] (W reflection folded in) are stacked so
    that, with two spatial rows packed per vector row and the im2col LHS holding
    H-padded rows [2r, 2r+1, 2r+2, 2r+3]:
        out[2r]   = p[2r]@T0   + p[2r+1]@T1 + p[2r+2]@T2   (output cols 0:WC)
        out[2r+1] = p[2r+1]@T0 + p[2r+2]@T1 + p[2r+3]@T2   (output cols WC:2WC)
    """
    T = []
    for dh in range(3):
        t = 0.0
        for dw in range(3):
            t = t + jnp.kron(_reflect_select(W, dw), w[dh, dw].astype(jnp.float32))
        T.append(t)
    Z = jnp.zeros_like(T[0])
    left = jnp.concatenate([T[0], T[1], T[2], Z], axis=0)
    right = jnp.concatenate([Z, T[0], T[1], T[2]], axis=0)
    return jnp.concatenate([left, right], axis=1).astype(jnp.bfloat16)


# ---------------------------- ResnetBlock forward ------------------------------

def resnet_block_forward(x_nchw, params):
    """x_nchw: (N, C, H, W) f32 -> (N, C, H, W); matches PyTorch ResnetBlock."""
    w1, b1, w2, b2 = params
    N, C, H, W = x_nchw.shape
    assert H % 2 == 0 and H >= 4 and W >= 3, "kernel assumes even H >= 4 and W >= 3"
    H2 = H // 2
    WC = W * C
    L = 2 * WC              # lane width of a packed row (128 at the test size)
    K = 4 * WC              # contraction dim of the stacked slab (256)

    # NCHW -> NHWC -> two spatial rows packed per vector row: (N, H/2, 2*W*C).
    x2d = jnp.transpose(x_nchw, (0, 2, 3, 1)).reshape(N, H2, L)

    t1 = _conv_slab(w1, W)
    t2 = _conv_slab(w2, W)
    b1r = jnp.tile(b1.reshape(1, C), (1, 2 * W)).astype(jnp.float32)
    b2r = jnp.tile(b2.reshape(1, C), (1, 2 * W)).astype(jnp.float32)

    # Computed VMEM budget: double-buffered image blocks + both weight slabs +
    # biases + im2col scratch, with 2x headroom and a generous floor.
    blk = H2 * L * 4
    vmem_bytes = 2 * (4 * blk + 2 * (K * L * 2) + 2 * (L * 4) + H2 * K * 4)
    vmem_bytes = int(max(vmem_bytes, 4 * 1024 * 1024))

    out2d = pl.pallas_call(
        _resnet_block_kernel,
        out_shape=jax.ShapeDtypeStruct((N, H2, L), x2d.dtype),
        grid=(N,),
        in_specs=[
            pl.BlockSpec((1, H2, L), lambda n: (n, 0, 0)),
            pl.BlockSpec((K, L), lambda n: (0, 0)),
            pl.BlockSpec((1, L), lambda n: (0, 0)),
            pl.BlockSpec((K, L), lambda n: (0, 0)),
            pl.BlockSpec((1, L), lambda n: (0, 0)),
        ],
        out_specs=pl.BlockSpec((1, H2, L), lambda n: (n, 0, 0)),
        scratch_shapes=[pltpu.VMEM((H2, K), jnp.float32)],
        compiler_params=pltpu.CompilerParams(
            dimension_semantics=("parallel",),
            vmem_limit_bytes=vmem_bytes,
        ),
    )(x2d, t1, b1r, t2, b2r)

    # (N, H/2, 2*W*C) -> NCHW
    return jnp.transpose(out2d.reshape(N, H, W, C), (0, 3, 1, 2))


# ------------------------------ params / reference -----------------------------

def init_params(key, dim):
    """Deterministic synthetic weights. Conv weights stored HWIO (3,3,Cin,Cout)."""
    k1, k2, k3, k4 = jax.random.split(key, 4)
    scale = 1.0 / (dim * 9) ** 0.5
    w1 = jax.random.uniform(k1, (3, 3, dim, dim), jnp.float32, -scale, scale)
    b1 = jax.random.uniform(k2, (dim,), jnp.float32, -scale, scale)
    w2 = jax.random.uniform(k3, (3, 3, dim, dim), jnp.float32, -scale, scale)
    b2 = jax.random.uniform(k4, (dim,), jnp.float32, -scale, scale)
    return w1, b1, w2, b2


def _ref_forward(x_nchw, params):
    w1, b1, w2, b2 = params

    def conv(x, w, b):
        y = jax.lax.conv_general_dilated(
            x, w, window_strides=(1, 1), padding="VALID",
            dimension_numbers=("NCHW", "HWIO", "NCHW"))
        return y + b.reshape(1, -1, 1, 1)

    xp = jnp.pad(x_nchw, ((0, 0), (0, 0), (1, 1), (1, 1)), mode="reflect")
    h = jax.nn.relu(conv(xp, w1, b1))
    hp = jnp.pad(h, ((0, 0), (0, 0), (1, 1), (1, 1)), mode="reflect")
    return x_nchw + conv(hp, w2, b2)


# ----------------------------------- main --------------------------------------

if __name__ == "__main__":
    key = jax.random.PRNGKey(0)
    kx, kp = jax.random.split(key)

    N, C, H, W = 2, 4, 16, 16
    x = jax.random.normal(kx, (N, C, H, W), jnp.float32)
    params = init_params(kp, C)

    fwd = jax.jit(resnet_block_forward)
    out = jax.block_until_ready(fwd(x, params))

    ref = _ref_forward(x, params)
    assert out.shape == (N, C, H, W)
    max_err = float(jnp.max(jnp.abs(out - ref)))
    # bf16 MXU operands (f32 accumulation) => small numerical delta vs pure-f32 ref.
    assert jnp.allclose(out, ref, atol=3e-2, rtol=3e-2), \
        f"mismatch vs reference (max_err={max_err})"

    print("KERNEL_OK")
</pallas_src>

<mosaic_0001>
module attributes {stable_mosaic.version = 11 : i64} {
  func.func @_resnet_block_kernel(%arg0: i32, %arg1: memref<1x8x128xf32, #tpu.memory_space<vmem>>, %arg2: memref<256x128xbf16, #tpu.memory_space<vmem>>, %arg3: memref<1x128xf32, #tpu.memory_space<vmem>>, %arg4: memref<256x128xbf16, #tpu.memory_space<vmem>>, %arg5: memref<1x128xf32, #tpu.memory_space<vmem>>, %arg6: memref<1x8x128xf32, #tpu.memory_space<vmem>>, %arg7: memref<8x256xf32, #tpu.memory_space<vmem>>) attributes {dimension_semantics = [#tpu.dimension_semantics<parallel>], iteration_bounds = array<i64: 2>, scalar_prefetch = 0 : i64, scratch_operands = 1 : i64, tpu.core_type = #tpu.core_type<tc>, window_params = [{transform_indices = @transform_0, window_bounds = array<i64: 1, 8, 128>}, {pipeline_mode = #tpu.pipeline_mode<synchronous>, transform_indices = @transform_1, window_bounds = array<i64: 256, 128>}, {pipeline_mode = #tpu.pipeline_mode<synchronous>, transform_indices = @transform_2, window_bounds = array<i64: 1, 128>}, {pipeline_mode = #tpu.pipeline_mode<synchronous>, transform_indices = @transform_3, window_bounds = array<i64: 256, 128>}, {pipeline_mode = #tpu.pipeline_mode<synchronous>, transform_indices = @transform_4, window_bounds = array<i64: 1, 128>}, {transform_indices = @transform_5, window_bounds = array<i64: 1, 8, 128>}]} {
    %c0 = arith.constant 0 : index
    %c0_0 = arith.constant 0 : index
    %c0_1 = arith.constant 0 : index
    %0 = vector.load %arg1[%c0, %c0_0, %c0_1] : memref<1x8x128xf32, #tpu.memory_space<vmem>>, vector<1x8x128xf32>
    %1 = vector.shape_cast %0 : vector<1x8x128xf32> to vector<8x128xf32>
    %c0_2 = arith.constant 0 : index
    %c64 = arith.constant 64 : index
    %2 = vector.load %arg7[%c0_2, %c64] : memref<8x256xf32, #tpu.memory_space<vmem>>, vector<8x128xf32>
    tpu.vector_store %arg7[%c0_2, %c64], %1 {strides = array<i32>} : memref<8x256xf32, #tpu.memory_space<vmem>>, vector<8x128xf32>,
    %3 = vector.extract_strided_slice %1 {offsets = [0, 64], sizes = [1, 64], strides = [1, 1]} : vector<8x128xf32> to vector<1x64xf32>
    %c0_3 = arith.constant 0 : index
    %c0_4 = arith.constant 0 : index
    %4 = vector.load %arg7[%c0_3, %c0_4] : memref<8x256xf32, #tpu.memory_space<vmem>>, vector<1x64xf32>
    tpu.vector_store %arg7[%c0_3, %c0_4], %3 {strides = array<i32>} : memref<8x256xf32, #tpu.memory_space<vmem>>, vector<1x64xf32>,
    %5 = vector.extract_strided_slice %1 {offsets = [0, 64], sizes = [7, 64], strides = [1, 1]} : vector<8x128xf32> to vector<7x64xf32>
    %c1 = arith.constant 1 : index
    %c0_5 = arith.constant 0 : index
    %6 = vector.load %arg7[%c1, %c0_5] : memref<8x256xf32, #tpu.memory_space<vmem>>, vector<7x64xf32>
    tpu.vector_store %arg7[%c1, %c0_5], %5 {strides = array<i32>} : memref<8x256xf32, #tpu.memory_space<vmem>>, vector<7x64xf32>,
    %7 = vector.extract_strided_slice %1 {offsets = [1, 0], sizes = [7, 64], strides = [1, 1]} : vector<8x128xf32> to vector<7x64xf32>
    %c0_6 = arith.constant 0 : index
    %c192 = arith.constant 192 : index
    %8 = vector.load %arg7[%c0_6, %c192] : memref<8x256xf32, #tpu.memory_space<vmem>>, vector<7x64xf32>
    tpu.vector_store %arg7[%c0_6, %c192], %7 {strides = array<i32>} : memref<8x256xf32, #tpu.memory_space<vmem>>, vector<7x64xf32>,
    %9 = vector.extract_strided_slice %1 {offsets = [7, 0], sizes = [1, 64], strides = [1, 1]} : vector<8x128xf32> to vector<1x64xf32>
    %c7 = arith.constant 7 : index
    %c192_7 = arith.constant 192 : index
    %10 = vector.load %arg7[%c7, %c192_7] : memref<8x256xf32, #tpu.memory_space<vmem>>, vector<1x64xf32>
    tpu.vector_store %arg7[%c7, %c192_7], %9 {strides = array<i32>} : memref<8x256xf32, #tpu.memory_space<vmem>>, vector<1x64xf32>,
    %c0_8 = arith.constant 0 : index
    %c0_9 = arith.constant 0 : index
    %11 = vector.load %arg7[%c0_8, %c0_9] : memref<8x256xf32, #tpu.memory_space<vmem>>, vector<8x256xf32>
    %12 = arith.truncf %11 : vector<8x256xf32> to vector<8x256xbf16>
    %c0_10 = arith.constant 0 : index
    %c0_11 = arith.constant 0 : index
    %13 = vector.load %arg2[%c0_10, %c0_11] : memref<256x128xbf16, #tpu.memory_space<vmem>>, vector<256x128xbf16>
    %cst = arith.constant dense<0.000000e+00> : vector<8x128xf32>
    %14 = tpu.matmul %12, %13, %cst {dimension_numbers = #tpu.dot_dimension_numbers<[1], [0], [0], [1], [0, 0, 1, 1], [], []>} : vector<8x256xbf16>, vector<256x128xbf16>, vector<8x128xf32> -> vector<8x128xf32>
    %c0_12 = arith.constant 0 : index
    %c0_13 = arith.constant 0 : index
    %15 = vector.load %arg3[%c0_12, %c0_13] : memref<1x128xf32, #tpu.memory_space<vmem>>, vector<1x128xf32>
    %16 = vector.broadcast %15 : vector<1x128xf32> to vector<8x128xf32>
    %17 = arith.addf %14, %16 : vector<8x128xf32>
    %cst_14 = arith.constant 0.000000e+00 : f32
    %18 = vector.broadcast %cst_14 : f32 to vector<8x128xf32>
    %19 = arith.maximumf %17, %18 : vector<8x128xf32>
    %c0_15 = arith.constant 0 : index
    %c64_16 = arith.constant 64 : index
    %20 = vector.load %arg7[%c0_15, %c64_16] : memref<8x256xf32, #tpu.memory_space<vmem>>, vector<8x128xf32>
    tpu.vector_store %arg7[%c0_15, %c64_16], %19 {strides = array<i32>} : memref<8x256xf32, #tpu.memory_space<vmem>>, vector<8x128xf32>,
    %21 = vector.extract_strided_slice %19 {offsets = [0, 64], sizes = [1, 64], strides = [1, 1]} : vector<8x128xf32> to vector<1x64xf32>
    %c0_17 = arith.constant 0 : index
    %c0_18 = arith.constant 0 : index
    %22 = vector.load %arg7[%c0_17, %c0_18] : memref<8x256xf32, #tpu.memory_space<vmem>>, vector<1x64xf32>
    tpu.vector_store %arg7[%c0_17, %c0_18], %21 {strides = array<i32>} : memref<8x256xf32, #tpu.memory_space<vmem>>, vector<1x64xf32>,
    %23 = vector.extract_strided_slice %19 {offsets = [0, 64], sizes = [7, 64], strides = [1, 1]} : vector<8x128xf32> to vector<7x64xf32>
    %c1_19 = arith.constant 1 : index
    %c0_20 = arith.constant 0 : index
    %24 = vector.load %arg7[%c1_19, %c0_20] : memref<8x256xf32, #tpu.memory_space<vmem>>, vector<7x64xf32>
    tpu.vector_store %arg7[%c1_19, %c0_20], %23 {strides = array<i32>} : memref<8x256xf32, #tpu.memory_space<vmem>>, vector<7x64xf32>,
    %25 = vector.extract_strided_slice %19 {offsets = [1, 0], sizes = [7, 64], strides = [1, 1]} : vector<8x128xf32> to vector<7x64xf32>
    %c0_21 = arith.constant 0 : index
    %c192_22 = arith.constant 192 : index
    %26 = vector.load %arg7[%c0_21, %c192_22] : memref<8x256xf32, #tpu.memory_space<vmem>>, vector<7x64xf32>
    tpu.vector_store %arg7[%c0_21, %c192_22], %25 {strides = array<i32>} : memref<8x256xf32, #tpu.memory_space<vmem>>, vector<7x64xf32>,
    %27 = vector.extract_strided_slice %19 {offsets = [7, 0], sizes = [1, 64], strides = [1, 1]} : vector<8x128xf32> to vector<1x64xf32>
    %c7_23 = arith.constant 7 : index
    %c192_24 = arith.constant 192 : index
    %28 = vector.load %arg7[%c7_23, %c192_24] : memref<8x256xf32, #tpu.memory_space<vmem>>, vector<1x64xf32>
    tpu.vector_store %arg7[%c7_23, %c192_24], %27 {strides = array<i32>} : memref<8x256xf32, #tpu.memory_space<vmem>>, vector<1x64xf32>,
    %c0_25 = arith.constant 0 : index
    %c0_26 = arith.constant 0 : index
    %29 = vector.load %arg7[%c0_25, %c0_26] : memref<8x256xf32, #tpu.memory_space<vmem>>, vector<8x256xf32>
    %30 = arith.truncf %29 : vector<8x256xf32> to vector<8x256xbf16>
    %c0_27 = arith.constant 0 : index
    %c0_28 = arith.constant 0 : index
    %31 = vector.load %arg4[%c0_27, %c0_28] : memref<256x128xbf16, #tpu.memory_space<vmem>>, vector<256x128xbf16>
    %cst_29 = arith.constant dense<0.000000e+00> : vector<8x128xf32>
    %32 = tpu.matmul %30, %31, %cst_29 {dimension_numbers = #tpu.dot_dimension_numbers<[1], [0], [0], [1], [0, 0, 1, 1], [], []>} : vector<8x256xbf16>, vector<256x128xbf16>, vector<8x128xf32> -> vector<8x128xf32>
    %c0_30 = arith.constant 0 : index
    %c0_31 = arith.constant 0 : index
    %33 = vector.load %arg5[%c0_30, %c0_31] : memref<1x128xf32, #tpu.memory_space<vmem>>, vector<1x128xf32>
    %34 = vector.broadcast %33 : vector<1x128xf32> to vector<8x128xf32>
    %35 = arith.addf %32, %34 : vector<8x128xf32>
    %36 = arith.addf %35, %1 : vector<8x128xf32>
    %c0_32 = arith.constant 0 : index
    %c0_33 = arith.constant 0 : index
    %c0_34 = arith.constant 0 : index
    %37 = vector.load %arg6[%c0_32, %c0_33, %c0_34] : memref<1x8x128xf32, #tpu.memory_space<vmem>>, vector<1x8x128xf32>
    %38 = vector.shape_cast %37 : vector<1x8x128xf32> to vector<8x128xf32>
    %39 = vector.shape_cast %36 : vector<8x128xf32> to vector<1x8x128xf32>
    tpu.vector_store %arg6[%c0_32, %c0_33, %c0_34], %39 {strides = array<i32>} : memref<1x8x128xf32, #tpu.memory_space<vmem>>, vector<1x8x128xf32>,
    return
  }
  func.func @transform_0(%arg0: i32) -> (i32, i32, i32) {
    %c0_i32 = arith.constant 0 : i32
    %c0_i32_0 = arith.constant 0 : i32
    %c0_i32_1 = arith.constant 0 : i32
    return %arg0, %c0_i32, %c0_i32_0 : i32, i32, i32
  }
  func.func @transform_1(%arg0: i32) -> (i32, i32) {
    %c0_i32 = arith.constant 0 : i32
    %c0_i32_0 = arith.constant 0 : i32
    %c0_i32_1 = arith.constant 0 : i32
    return %c0_i32, %c0_i32_0 : i32, i32
  }
  func.func @transform_2(%arg0: i32) -> (i32, i32) {
    %c0_i32 = arith.constant 0 : i32
    %c0_i32_0 = arith.constant 0 : i32
    %c0_i32_1 = arith.constant 0 : i32
    return %c0_i32, %c0_i32_0 : i32, i32
  }
  func.func @transform_3(%arg0: i32) -> (i32, i32) {
    %c0_i32 = arith.constant 0 : i32
    %c0_i32_0 = arith.constant 0 : i32
    %c0_i32_1 = arith.constant 0 : i32
    return %c0_i32, %c0_i32_0 : i32, i32
  }
  func.func @transform_4(%arg0: i32) -> (i32, i32) {
    %c0_i32 = arith.constant 0 : i32
    %c0_i32_0 = arith.constant 0 : i32
    %c0_i32_1 = arith.constant 0 : i32
    return %c0_i32, %c0_i32_0 : i32, i32
  }
  func.func @transform_5(%arg0: i32) -> (i32, i32, i32) {
    %c0_i32 = arith.constant 0 : i32
    %c0_i32_0 = arith.constant 0 : i32
    %c0_i32_1 = arith.constant 0 : i32
    return %arg0, %c0_i32, %c0_i32_0 : i32, i32, i32
  }
}

</mosaic_0001>

<llo_original>
// kernel: resnet_block_forward.1
$region0: #{resnet_block_forward.1}
  #allocation0 [shape = 'u32[]', space=smem, size = 0x4, offset = 0x4, fixed_abs, tag = 'smem constant byte address 0x4 - core index']
  #allocation1 [shape = 'u32[144,128]{1,0:T(1,128)}', space=vmem, size = 0x12000, scoped, tag = 'internal scratch']
  #allocation2 [shape = 'f32[8,256]{1,0:T(8,128)}', space=vmem, size = 0x2000, scoped, tag = 'scratch operand']
  %s0 = inlined_call_operand.vmem [shape: f32[2,8,128], index: 0, kind: input, shape index: {}]
  %s1 = inlined_call_operand.vmem [shape: bf16[256,128], index: 1, kind: input, shape index: {}]
  %s2 = inlined_call_operand.vmem [shape: f32[1,128], index: 2, kind: input, shape index: {}]
  %s3 = inlined_call_operand.vmem [shape: bf16[256,128], index: 3, kind: input, shape index: {}]
  %s4 = inlined_call_operand.vmem [shape: f32[1,128], index: 4, kind: input, shape index: {}]
  %s5 = inlined_call_operand.vmem [shape: f32[2,8,128], index: 5, kind: output, shape index: {}]
  %s6 = sld [smem:[#allocation0]]
  $region53: #{resnet_block_forward.1} parent=0
    _
  %s8 = ssub.s32 1, %s6
  %s9 = scalar_select 0, %s8, %s6
  loop: start=0, step=1, limit=4
  $region2: #{resnet_block_forward.1} parent=0 // loop_pre_header
    _
  $region3: #{resnet_block_forward.1} parent=0 // loop_header
    %s11 = sphi 0, %s15
    %p12 = scmp.ge.s32.totalorder %s11, 4
    %s21 = sphi 0, %s23
    %s24 = sphi 0, %s21
    %s25 = sphi 0, %s24
    %s41 = sphi 0, %s25
    %s45 = sphi 0, %s45
    %s47 = sphi 0, %s45
    %s48 = sphi 0, %s47
    %s62 = sphi 0, %s48
    %s66 = sphi 0, %s66
    %s68 = sphi 0, %s66
    %s69 = sphi 0, %s68
    %s83 = sphi 0, %s69
    %s87 = sphi 0, %s87
    %s89 = sphi 0, %s87
    %s90 = sphi 0, %s89
    %s104 = sphi 0, %s90
    %s108 = sphi 0, %s108
    %s110 = sphi 0, %s108
    %s111 = sphi 0, %s110
    %s125 = sphi 0, %s111
    %s131 = sphi 0, %s133
    %s134 = sphi 0, %s131
    %s135 = sphi 0, %s134
    %s151 = sphi 0, %s135
  $region4: #{resnet_block_forward.1} parent=0 // loop_header_branch
    %14 = sbr.rel (%p12) target = $region8
  $region5: #{resnet_block_forward.1} parent=0 // loop_body
    %s16 = ssub.s32 %s11, 1
    %s17 = ssub.s32 %s11, 2
    %s18 = sadd.s32 %s11, 1
    %s19 = ssub.s32 %s11, %s18
    %p20 = scmp.eq.s32.totalorder %s19, 0
    %s22 = sadd.s32 %s21, 1
    %s23 = scalar_select %p20, %s21, %s22
    %p26 = pneg %p20
    %p27 = scmp.eq.s32.totalorder %s11, 1
    %p28 = por %p26, %p27
    %p29 = scmp.ne.s32.totalorder %s21, %s24
    %p30 = scmp.eq.s32.totalorder %s11, 0
    %p31 = por %p29, %p30
    %p32 = scmp.ne.s32.totalorder %s21, %s24
    %p33 = scmp.eq.s32.totalorder %s16, 1
    %p34 = por %p32, %p33
    %p35 = scmp.ne.s32.totalorder %s24, %s25
    %p36 = scmp.eq.s32.totalorder %s16, 0
    %p37 = por %p35, %p36
    %p38 = scmp.ne.s32.totalorder %s24, %s25
    %p39 = scmp.eq.s32.totalorder %s17, 1
    %p40 = por %p38, %p39
    %p42 = scmp.ne.s32.totalorder %s25, %s41
    %p43 = scmp.eq.s32.totalorder %s17, 0
    %p44 = por %p42, %p43
    %s46 = sadd.s32 %s45, 1
    %p49 = scmp.eq.s32.totalorder %s11, 1
    %p50 = scmp.ne.s32.totalorder %s45, %s47
    %p51 = scmp.eq.s32.totalorder %s11, 0
    %p52 = por %p50, %p51
    %p53 = scmp.ne.s32.totalorder %s45, %s47
    %p54 = scmp.eq.s32.totalorder %s16, 1
    %p55 = por %p53, %p54
    %p56 = scmp.ne.s32.totalorder %s47, %s48
    %p57 = scmp.eq.s32.totalorder %s16, 0
    %p58 = por %p56, %p57
    %p59 = scmp.ne.s32.totalorder %s47, %s48
    %p60 = scmp.eq.s32.totalorder %s17, 1
    %p61 = por %p59, %p60
    %p63 = scmp.ne.s32.totalorder %s48, %s62
    %p64 = scmp.eq.s32.totalorder %s17, 0
    %p65 = por %p63, %p64
    %s67 = sadd.s32 %s66, 1
    %p70 = scmp.eq.s32.totalorder %s11, 1
    %p71 = scmp.ne.s32.totalorder %s66, %s68
    %p72 = scmp.eq.s32.totalorder %s11, 0
    %p73 = por %p71, %p72
    %p74 = scmp.ne.s32.totalorder %s66, %s68
    %p75 = scmp.eq.s32.totalorder %s16, 1
    %p76 = por %p74, %p75
    %p77 = scmp.ne.s32.totalorder %s68, %s69
    %p78 = scmp.eq.s32.totalorder %s16, 0
    %p79 = por %p77, %p78
    %p80 = scmp.ne.s32.totalorder %s68, %s69
    %p81 = scmp.eq.s32.totalorder %s17, 1
    %p82 = por %p80, %p81
    %p84 = scmp.ne.s32.totalorder %s69, %s83
    %p85 = scmp.eq.s32.totalorder %s17, 0
    %p86 = por %p84, %p85
    %s88 = sadd.s32 %s87, 1
    %p91 = scmp.eq.s32.totalorder %s11, 1
    %p92 = scmp.ne.s32.totalorder %s87, %s89
    %p93 = scmp.eq.s32.totalorder %s11, 0
    %p94 = por %p92, %p93
    %p95 = scmp.ne.s32.totalorder %s87, %s89
    %p96 = scmp.eq.s32.totalorder %s16, 1
    %p97 = por %p95, %p96
    %p98 = scmp.ne.s32.totalorder %s89, %s90
    %p99 = scmp.eq.s32.totalorder %s16, 0
    %p100 = por %p98, %p99
    %p101 = scmp.ne.s32.totalorder %s89, %s90
    %p102 = scmp.eq.s32.totalorder %s17, 1
    %p103 = por %p101, %p102
    %p105 = scmp.ne.s32.totalorder %s90, %s104
    %p106 = scmp.eq.s32.totalorder %s17, 0
    %p107 = por %p105, %p106
    %s109 = sadd.s32 %s108, 1
    %p112 = scmp.eq.s32.totalorder %s11, 1
    %p113 = scmp.ne.s32.totalorder %s108, %s110
    %p114 = scmp.eq.s32.totalorder %s11, 0
    %p115 = por %p113, %p114
    %p116 = scmp.ne.s32.totalorder %s108, %s110
    %p117 = scmp.eq.s32.totalorder %s16, 1
    %p118 = por %p116, %p117
    %p119 = scmp.ne.s32.totalorder %s110, %s111
    %p120 = scmp.eq.s32.totalorder %s16, 0
    %p121 = por %p119, %p120
    %p122 = scmp.ne.s32.totalorder %s110, %s111
    %p123 = scmp.eq.s32.totalorder %s17, 1
    %p124 = por %p122, %p123
    %p126 = scmp.ne.s32.totalorder %s111, %s125
    %p127 = scmp.eq.s32.totalorder %s17, 0
    %p128 = por %p126, %p127
    %s129 = ssub.s32 %s11, %s18
    %p130 = scmp.eq.s32.totalorder %s129, 0
    %s132 = sadd.s32 %s131, 1
    %s133 = scalar_select %p130, %s131, %s132
    %p136 = pneg %p130
    %p137 = scmp.eq.s32.totalorder %s11, 1
    %p138 = por %p136, %p137
    %p139 = scmp.ne.s32.totalorder %s131, %s134
    %p140 = scmp.eq.s32.totalorder %s11, 0
    %p141 = por %p139, %p140
    %p142 = scmp.ne.s32.totalorder %s131, %s134
    %p143 = scmp.eq.s32.totalorder %s16, 1
    %p144 = por %p142, %p143
    %p145 = scmp.ne.s32.totalorder %s134, %s135
    %p146 = scmp.eq.s32.totalorder %s16, 0
    %p147 = por %p145, %p146
    %p148 = scmp.ne.s32.totalorder %s134, %s135
    %p149 = scmp.eq.s32.totalorder %s17, 1
    %p150 = por %p148, %p149
    %p152 = scmp.ne.s32.totalorder %s135, %s151
    %p153 = scmp.eq.s32.totalorder %s17, 0
    %p154 = por %p152, %p153
    %p155 = scmp.le.s32.totalorder 1, %s11
    %p156 = scmp.lt.s32.totalorder %s11, 3
    %p157 = pnand %p155, %p156
    %p158 = pneg %p157
    // Predicated region
    $region9: #{resnet_block_forward.1} parent=5 // pred_check
      _
    $region10: #{resnet_block_forward.1} parent=5 // pred_check_branch
      %160 = sbr.rel (%p157) target = $region12
    $region11: #{resnet_block_forward.1} parent=5 // pred_region
      %s161 = ssub.s32 %s11, 1
      // Predicated region
      $region13: #{resnet_block_forward.1} parent=11 // pred_check
        %p162 = pneg %p58
      $region14: #{resnet_block_forward.1} parent=11 // pred_check_branch
        %164 = sbr.rel (%p162) target = $region16
      $region15: #{resnet_block_forward.1} parent=11 // pred_region
        _
      $region16: #{resnet_block_forward.1} parent=11 // pred_fallthru
        _
      // Predicated region
      $region17: #{resnet_block_forward.1} parent=11 // pred_check
        %p165 = pneg %p79
      $region18: #{resnet_block_forward.1} parent=11 // pred_check_branch
        %167 = sbr.rel (%p165) target = $region20
      $region19: #{resnet_block_forward.1} parent=11 // pred_region
        _
      $region20: #{resnet_block_forward.1} parent=11 // pred_fallthru
        _
      // Predicated region
      $region21: #{resnet_block_forward.1} parent=11 // pred_check
        %p168 = pneg %p100
      $region22: #{resnet_block_forward.1} parent=11 // pred_check_branch
        %170 = sbr.rel (%p168) target = $region24
      $region23: #{resnet_block_forward.1} parent=11 // pred_region
        _
      $region24: #{resnet_block_forward.1} parent=11 // pred_fallthru
        _
      // Predicated region
      $region25: #{resnet_block_forward.1} parent=11 // pred_check
        %p171 = pneg %p121
      $region26: #{resnet_block_forward.1} parent=11 // pred_check_branch
        %173 = sbr.rel (%p171) target = $region28
      $region27: #{resnet_block_forward.1} parent=11 // pred_region
        _
      $region28: #{resnet_block_forward.1} parent=11 // pred_fallthru
        _
    $region12: #{resnet_block_forward.1} parent=5 // pred_fallthru
      _
    %p174 = scmp.lt.s32.totalorder %s11, 2
    // Predicated region
    $region29: #{resnet_block_forward.1} parent=5 // pred_check
      %p175 = pneg %p174
    $region30: #{resnet_block_forward.1} parent=5 // pred_check_branch
      %177 = sbr.rel (%p175) target = $region32
    $region31: #{resnet_block_forward.1} parent=5 // pred_region
      // Predicated region
      $region33: #{resnet_block_forward.1} parent=31 // pred_check
        %p178 = pneg %p31
      $region34: #{resnet_block_forward.1} parent=31 // pred_check_branch
        %180 = sbr.rel (%p178) target = $region36
      $region35: #{resnet_block_forward.1} parent=31 // pred_region
        %p181 = scmp.lt.s32.totalorder %s11, 1
        %s182 = scalar_select %p181, %s11, 1
        %s183 = smul.addr %s182, 8
        %s184 = scalar_lea.vmem %s0, %s183
      $region36: #{resnet_block_forward.1} parent=31 // pred_fallthru
        _
    $region32: #{resnet_block_forward.1} parent=5 // pred_fallthru
      _
    %p185 = scmp.le.s32.totalorder 1, %s11
    %p186 = scmp.lt.s32.totalorder %s11, 3
    %p187 = pnand %p185, %p186
    %p188 = pneg %p187
    // Predicated region
    $region37: #{resnet_block_forward.1} parent=5 // pred_check
      _
    $region38: #{resnet_block_forward.1} parent=5 // pred_check_branch
      %190 = sbr.rel (%p187) target = $region40
    $region39: #{resnet_block_forward.1} parent=5 // pred_region
      %s191 = ssub.s32 %s11, 1
      %p192 = scmp.lt.s32.totalorder %s16, 1
      %s193 = scalar_select %p192, %s16, 1
      %s194 = smul.addr %s193, 8
      %s195 = scalar_lea.vmem %s0, %s194
      %p196 = pneg %p37
      %p197 = pneg %p34
      %p198 = pneg %p58
      %p199 = pneg %p55
      %p200 = pneg %p79
      %p201 = pneg %p76
      %p202 = pneg %p100
      %p203 = pneg %p97
      %p204 = pneg %p121
      %p205 = pneg %p118
      %p206 = pneg %p147
      %p207 = pneg %p144
      %p208 = scmp.lt.s32.totalorder %s16, 1
      %s209 = scalar_select %p208, %s16, 1
      %s210 = smul.addr %s209, 8
      %s211 = scalar_lea.vmem %s5, %s210
      %p212 = scmp.lt.s32.totalorder %s16, 1
      %s213 = scalar_select %p212, %s16, 1
      %s214 = smul.addr %s213, 8
      %s215 = scalar_lea.vmem %s0, %s214
      %p216 = scmp.lt.s32.totalorder %s16, 1
      %s217 = scalar_select %p216, %s16, 1
      %s218 = smul.addr %s217, 8
      %s219 = scalar_lea.vmem %s5, %s218
      %v221 = vld [vmem:[%s215] sm:$0xff]
      %223 = vrot.lane.b32.xlu0 %v221, 64
      %v224 = vpop.permute.xlu0 %223
      %vm226 = vcmask 1048064
      %227 = vst.msk [vmem:[#allocation2] sm:$0xff] %vm226, %v224
      %vm228 = vcmask 523264
      %229 = vst.msk [vmem:[#allocation2 + $0x8] sm:$0xff] %vm228, %v224
      %vm230 = vcmask 516096
      %231 = vst.msk [vmem:[#allocation2] sm:$0x1] %vm230, %v224
      %v232 = vrot.slane %v221, 7
      %233 = vrot.lane.b32.xlu0 %v232, 64
      %v234 = vpop.permute.xlu0 %233
      %vm236 = vcmask 523265
      %237 = vst.msk [vmem:[#allocation2] sm:$0xfe] %vm236, %v234
      %v238 = vrot.slane %v221, 1
      %239 = vrot.lane.b32.xlu0 %v238, 64
      %v240 = vpop.permute.xlu0 %239
      %vm242 = vcmask 1047040
      %243 = vst.msk [vmem:[#allocation2 + $0x8] sm:$0x7f] %vm242, %v240
      %vm244 = vcmask 1040896
      %245 = vst.msk [vmem:[#allocation2 + $0xf] sm:$0x1] %vm244, %v234
      %v246 = vld [vmem:[#allocation2] sm:$0xff]
      %v247 = vld [vmem:[#allocation2 + $0x8] sm:$0xff]
      %v248 = vpack.c.bf16 %v246, %v246
      %v249 = vpack.c.bf16 %v247, %v247
      %v250 = vld [vmem:[%s1] sm:$0xf]
      %v251 = vld [vmem:[%s1 + $0x4] sm:$0xf]
      %v252 = vld [vmem:[%s1 + $0x8] sm:$0xf]
      %v253 = vld [vmem:[%s1 + $0xc] sm:$0xf]
      %v254 = vld [vmem:[%s1 + $0x10] sm:$0xf]
      %v255 = vld [vmem:[%s1 + $0x14] sm:$0xf]
      %v256 = vld [vmem:[%s1 + $0x18] sm:$0xf]
      %v257 = vld [vmem:[%s1 + $0x1c] sm:$0xf]
      %v258 = vld [vmem:[%s1 + $0x20] sm:$0xf]
      %v259 = vld [vmem:[%s1 + $0x24] sm:$0xf]
      %v260 = vld [vmem:[%s1 + $0x28] sm:$0xf]
      %v261 = vld [vmem:[%s1 + $0x2c] sm:$0xf]
      %v262 = vld [vmem:[%s1 + $0x30] sm:$0xf]
      %v263 = vld [vmem:[%s1 + $0x34] sm:$0xf]
      %v264 = vld [vmem:[%s1 + $0x38] sm:$0xf]
      %v265 = vld [vmem:[%s1 + $0x3c] sm:$0xf]
      %v266 = vld [vmem:[%s1 + $0x40] sm:$0xf]
      %v267 = vld [vmem:[%s1 + $0x44] sm:$0xf]
      %v268 = vld [vmem:[%s1 + $0x48] sm:$0xf]
      %v269 = vld [vmem:[%s1 + $0x4c] sm:$0xf]
      %v270 = vld [vmem:[%s1 + $0x50] sm:$0xf]
      %v271 = vld [vmem:[%s1 + $0x54] sm:$0xf]
      %v272 = vld [vmem:[%s1 + $0x58] sm:$0xf]
      %v273 = vld [vmem:[%s1 + $0x5c] sm:$0xf]
      %v274 = vld [vmem:[%s1 + $0x60] sm:$0xf]
      %v275 = vld [vmem:[%s1 + $0x64] sm:$0xf]
      %v276 = vld [vmem:[%s1 + $0x68] sm:$0xf]
      %v277 = vld [vmem:[%s1 + $0x6c] sm:$0xf]
      %v278 = vld [vmem:[%s1 + $0x70] sm:$0xf]
      %v279 = vld [vmem:[%s1 + $0x74] sm:$0xf]
      %v280 = vld [vmem:[%s1 + $0x78] sm:$0xf]
      %v281 = vld [vmem:[%s1 + $0x7c] sm:$0xf]
      %v282 = vld [vmem:[%s2] sm:$0x1]
      %v284 = vlaneseq
      %v285 = vshrl.u32 %v284, 7
      %v286 = vsub.s32 0, %v285
      %v287 = vrot.slane %v282, %v286
      %v321 = vunpack.c.l.b16 %v250
      %v322 = vunpack.c.l.b16 %v251
      %v323 = vunpack.c.l.b16 %v252
      %v324 = vunpack.c.l.b16 %v253
      %v325 = vunpack.c.l.b16 %v254
      %v326 = vunpack.c.l.b16 %v255
      %v327 = vunpack.c.l.b16 %v256
      %v328 = vunpack.c.l.b16 %v257
      %v329 = vunpack.c.l.b16 %v258
      %v330 = vunpack.c.l.b16 %v259
      %v331 = vunpack.c.l.b16 %v260
      %v332 = vunpack.c.l.b16 %v261
      %v333 = vunpack.c.l.b16 %v262
      %v334 = vunpack.c.l.b16 %v263
      %v335 = vunpack.c.l.b16 %v264
      %v336 = vunpack.c.l.b16 %v265
      %v337 = vunpack.c.l.b16 %v266
      %v338 = vunpack.c.l.b16 %v267
      %v339 = vunpack.c.l.b16 %v268
      %v340 = vunpack.c.l.b16 %v269
      %v341 = vunpack.c.l.b16 %v270
      %v342 = vunpack.c.l.b16 %v271
      %v343 = vunpack.c.l.b16 %v272
      %v344 = vunpack.c.l.b16 %v273
      %v345 = vunpack.c.l.b16 %v274
      %v346 = vunpack.c.l.b16 %v275
      %v347 = vunpack.c.l.b16 %v276
      %v348 = vunpack.c.l.b16 %v277
      %v349 = vunpack.c.l.b16 %v278
      %v350 = vunpack.c.l.b16 %v279
      %v351 = vunpack.c.l.b16 %v280
      %v352 = vunpack.c.l.b16 %v281
      %v353 = vpack.c.b16 %v322, %v321
      %v354 = vpack.c.b16 %v324, %v323
      %v355 = vpack.c.b16 %v326, %v325
      %v356 = vpack.c.b16 %v328, %v327
      %v357 = vpack.c.b16 %v330, %v329
      %v358 = vpack.c.b16 %v332, %v331
      %v359 = vpack.c.b16 %v334, %v333
      %v360 = vpack.c.b16 %v336, %v335
      %v361 = vpack.c.b16 %v338, %v337
      %v362 = vpack.c.b16 %v340, %v339
      %v363 = vpack.c.b16 %v342, %v341
      %v364 = vpack.c.b16 %v344, %v343
      %v365 = vpack.c.b16 %v346, %v345
      %v366 = vpack.c.b16 %v348, %v347
      %v367 = vpack.c.b16 %v350, %v349
      %v368 = vpack.c.b16 %v352, %v351
      %385 = vmatprep.subr.bf16.mxu0 0
      %386 = vmatpush1.bf16.msra.mxu0 %v353
      %387 = vmatprep.subr.bf16.mxu0 0
      %388 = vmatpush1.bf16.msra.mxu0 %v354
      %389 = vmatprep.subr.bf16.mxu0 0
      %390 = vmatpush1.bf16.msra.mxu0 %v355
      %391 = vmatprep.subr.bf16.mxu0 0
      %392 = vmatpush1.bf16.msra.mxu0 %v356
      %393 = vmatprep.subr.bf16.mxu0 0
      %394 = vmatpush1.bf16.msra.mxu0 %v357
      %395 = vmatprep.subr.bf16.mxu0 0
      %396 = vmatpush1.bf16.msra.mxu0 %v358
      %397 = vmatprep.subr.bf16.mxu0 0
      %398 = vmatpush1.bf16.msra.mxu0 %v359
      %399 = vmatprep.subr.bf16.mxu0 0
      %400 = vmatpush1.bf16.msra.mxu0 %v360
      %401 = vmatprep.subr.bf16.mxu0 0
      %402 = vmatpush1.bf16.msra.mxu0 %v361
      %403 = vmatprep.subr.bf16.mxu0 0
      %404 = vmatpush1.bf16.msra.mxu0 %v362
      %405 = vmatprep.subr.bf16.mxu0 0
      %406 = vmatpush1.bf16.msra.mxu0 %v363
      %407 = vmatprep.subr.bf16.mxu0 0
      %408 = vmatpush1.bf16.msra.mxu0 %v364
      %409 = vmatprep.subr.bf16.mxu0 0
      %410 = vmatpush1.bf16.msra.mxu0 %v365
      %411 = vmatprep.subr.bf16.mxu0 0
      %412 = vmatpush1.bf16.msra.mxu0 %v366
      %413 = vmatprep.subr.bf16.mxu0 0
      %414 = vmatpush1.bf16.msra.mxu0 %v367
      %415 = vmatprep.subr.bf16.mxu0 0
      %416 = vmatpush1.bf16.msra.mxu0 %v368
      %417 = vmatprep.mubr.bf16.mxu0 %v249
      %418 = vmatmul.mubr.bf16.gmra.mrb[0].mxu0 %v248
      %v419 = vpop.f32.mrb[0].mxu0
      %v420 = vadd.f32 %v287, %v419
      %v421 = vpop.f32.mrb[0].mxu0
      %v422 = vpop.f32.mrb[0].mxu0
      %v423 = vpop.f32.mrb[0].mxu0
      %424 = vdwg.mxu0
      %v425 = vmax.f32 %v420, 0.0
      %427 = vrot.lane.b32.xlu0 %v425, 64
      %v428 = vpop.permute.xlu0 %427
      %430 = vst.msk [vmem:[#allocation2] sm:$0xff] %vm226, %v428
      %431 = vst.msk [vmem:[#allocation2 + $0x8] sm:$0xff] %vm228, %v428
      %432 = vst.msk [vmem:[#allocation2] sm:$0x1] %vm230, %v428
      %v433 = vrot.slane %v425, 7
      %434 = vrot.lane.b32.xlu0 %v433, 64
      %v435 = vpop.permute.xlu0 %434
      %437 = vst.msk [vmem:[#allocation2] sm:$0xfe] %vm236, %v435
      %v438 = vrot.slane %v425, 1
      %439 = vrot.lane.b32.xlu0 %v438, 64
      %v440 = vpop.permute.xlu0 %439
      %442 = vst.msk [vmem:[#allocation2 + $0x8] sm:$0x7f] %vm242, %v440
      %443 = vst.msk [vmem:[#allocation2 + $0xf] sm:$0x1] %vm244, %v435
      %v444 = vld [vmem:[#allocation2] sm:$0xff]
      %v445 = vld [vmem:[#allocation2 + $0x8] sm:$0xff]
      %v446 = vpack.c.bf16 %v444, %v444
      %v447 = vpack.c.bf16 %v445, %v445
      %v448 = vld [vmem:[%s3] sm:$0xf]
      %v449 = vld [vmem:[%s3 + $0x4] sm:$0xf]
      %v450 = vld [vmem:[%s3 + $0x8] sm:$0xf]
      %v451 = vld [vmem:[%s3 + $0xc] sm:$0xf]
      %v452 = vld [vmem:[%s3 + $0x10] sm:$0xf]
      %v453 = vld [vmem:[%s3 + $0x14] sm:$0xf]
      %v454 = vld [vmem:[%s3 + $0x18] sm:$0xf]
      %v455 = vld [vmem:[%s3 + $0x1c] sm:$0xf]
      %v456 = vld [vmem:[%s3 + $0x20] sm:$0xf]
      %v457 = vld [vmem:[%s3 + $0x24] sm:$0xf]
      %v458 = vld [vmem:[%s3 + $0x28] sm:$0xf]
      %v459 = vld [vmem:[%s3 + $0x2c] sm:$0xf]
      %v460 = vld [vmem:[%s3 + $0x30] sm:$0xf]
      %v461 = vld [vmem:[%s3 + $0x34] sm:$0xf]
      %v462 = vld [vmem:[%s3 + $0x38] sm:$0xf]
      %v463 = vld [vmem:[%s3 + $0x3c] sm:$0xf]
      %v464 = vld [vmem:[%s3 + $0x40] sm:$0xf]
      %v465 = vld [vmem:[%s3 + $0x44] sm:$0xf]
      %v466 = vld [vmem:[%s3 + $0x48] sm:$0xf]
      %v467 = vld [vmem:[%s3 + $0x4c] sm:$0xf]
      %v468 = vld [vmem:[%s3 + $0x50] sm:$0xf]
      %v469 = vld [vmem:[%s3 + $0x54] sm:$0xf]
      %v470 = vld [vmem:[%s3 + $0x58] sm:$0xf]
      %v471 = vld [vmem:[%s3 + $0x5c] sm:$0xf]
      %v472 = vld [vmem:[%s3 + $0x60] sm:$0xf]
      %v473 = vld [vmem:[%s3 + $0x64] sm:$0xf]
      %v474 = vld [vmem:[%s3 + $0x68] sm:$0xf]
      %v475 = vld [vmem:[%s3 + $0x6c] sm:$0xf]
      %v476 = vld [vmem:[%s3 + $0x70] sm:$0xf]
      %v477 = vld [vmem:[%s3 + $0x74] sm:$0xf]
      %v478 = vld [vmem:[%s3 + $0x78] sm:$0xf]
      %v479 = vld [vmem:[%s3 + $0x7c] sm:$0xf]
      %v480 = vld [vmem:[%s4] sm:$0x1]
      %v482 = vlaneseq
      %v483 = vshrl.u32 %v482, 7
      %v484 = vsub.s32 0, %v483
      %v485 = vrot.slane %v480, %v484
      %v519 = vunpack.c.l.b16 %v448
      %v520 = vunpack.c.l.b16 %v449
      %v521 = vunpack.c.l.b16 %v450
      %v522 = vunpack.c.l.b16 %v451
      %v523 = vunpack.c.l.b16 %v452
      %v524 = vunpack.c.l.b16 %v453
      %v525 = vunpack.c.l.b16 %v454
      %v526 = vunpack.c.l.b16 %v455
      %v527 = vunpack.c.l.b16 %v456
      %v528 = vunpack.c.l.b16 %v457
      %v529 = vunpack.c.l.b16 %v458
      %v530 = vunpack.c.l.b16 %v459
      %v531 = vunpack.c.l.b16 %v460
      %v532 = vunpack.c.l.b16 %v461
      %v533 = vunpack.c.l.b16 %v462
      %v534 = vunpack.c.l.b16 %v463
      %v535 = vunpack.c.l.b16 %v464
      %v536 = vunpack.c.l.b16 %v465
      %v537 = vunpack.c.l.b16 %v466
      %v538 = vunpack.c.l.b16 %v467
      %v539 = vunpack.c.l.b16 %v468
      %v540 = vunpack.c.l.b16 %v469
      %v541 = vunpack.c.l.b16 %v470
      %v542 = vunpack.c.l.b16 %v471
      %v543 = vunpack.c.l.b16 %v472
      %v544 = vunpack.c.l.b16 %v473
      %v545 = vunpack.c.l.b16 %v474
      %v546 = vunpack.c.l.b16 %v475
      %v547 = vunpack.c.l.b16 %v476
      %v548 = vunpack.c.l.b16 %v477
      %v549 = vunpack.c.l.b16 %v478
      %v550 = vunpack.c.l.b16 %v479
      %v551 = vpack.c.b16 %v520, %v519
      %v552 = vpack.c.b16 %v522, %v521
      %v553 = vpack.c.b16 %v524, %v523
      %v554 = vpack.c.b16 %v526, %v525
      %v555 = vpack.c.b16 %v528, %v527
      %v556 = vpack.c.b16 %v530, %v529
      %v557 = vpack.c.b16 %v532, %v531
      %v558 = vpack.c.b16 %v534, %v533
      %v559 = vpack.c.b16 %v536, %v535
      %v560 = vpack.c.b16 %v538, %v537
      %v561 = vpack.c.b16 %v540, %v539
      %v562 = vpack.c.b16 %v542, %v541
      %v563 = vpack.c.b16 %v544, %v543
      %v564 = vpack.c.b16 %v546, %v545
      %v565 = vpack.c.b16 %v548, %v547
      %v566 = vpack.c.b16 %v550, %v549
      %583 = vmatprep.subr.bf16.mxu0 0
      %584 = vmatpush1.bf16.msra.mxu0 %v551
      %585 = vmatprep.subr.bf16.mxu0 0
      %586 = vmatpush1.bf16.msra.mxu0 %v552
      %587 = vmatprep.subr.bf16.mxu0 0
      %588 = vmatpush1.bf16.msra.mxu0 %v553
      %589 = vmatprep.subr.bf16.mxu0 0
      %590 = vmatpush1.bf16.msra.mxu0 %v554
      %591 = vmatprep.subr.bf16.mxu0 0
      %592 = vmatpush1.bf16.msra.mxu0 %v555
      %593 = vmatprep.subr.bf16.mxu0 0
      %594 = vmatpush1.bf16.msra.mxu0 %v556
      %595 = vmatprep.subr.bf16.mxu0 0
      %596 = vmatpush1.bf16.msra.mxu0 %v557
      %597 = vmatprep.subr.bf16.mxu0 0
      %598 = vmatpush1.bf16.msra.mxu0 %v558
      %599 = vmatprep.subr.bf16.mxu0 0
      %600 = vmatpush1.bf16.msra.mxu0 %v559
      %601 = vmatprep.subr.bf16.mxu0 0
      %602 = vmatpush1.bf16.msra.mxu0 %v560
      %603 = vmatprep.subr.bf16.mxu0 0
      %604 = vmatpush1.bf16.msra.mxu0 %v561
      %605 = vmatprep.subr.bf16.mxu0 0
      %606 = vmatpush1.bf16.msra.mxu0 %v562
      %607 = vmatprep.subr.bf16.mxu0 0
      %608 = vmatpush1.bf16.msra.mxu0 %v563
      %609 = vmatprep.subr.bf16.mxu0 0
      %610 = vmatpush1.bf16.msra.mxu0 %v564
      %611 = vmatprep.subr.bf16.mxu0 0
      %612 = vmatpush1.bf16.msra.mxu0 %v565
      %613 = vmatprep.subr.bf16.mxu0 0
      %614 = vmatpush1.bf16.msra.mxu0 %v566
      %615 = vmatprep.mubr.bf16.mxu0 %v447
      %616 = vmatmul.mubr.bf16.gmra.mrb[0].mxu0 %v446
      %v617 = vpop.f32.mrb[0].mxu0
      %v618 = vadd.f32 %v485, %v617
      %v619 = vpop.f32.mrb[0].mxu0
      %v620 = vpop.f32.mrb[0].mxu0
      %v621 = vpop.f32.mrb[0].mxu0
      %622 = vdwg.mxu0
      %v623 = vadd.f32 %v618, %v221
      %624 = vst [vmem:[%s219] sm:$0xff] %v623
      %p625 = scmp.lt.s32.totalorder %s16, 1
      %s626 = scalar_select %p625, %s16, 1
      %s627 = smul.addr %s626, 8
      %s628 = scalar_lea.vmem %s5, %s627
      // Predicated region
      $region41: #{resnet_block_forward.1} parent=39 // pred_check
        %p629 = pneg %p144
      $region42: #{resnet_block_forward.1} parent=39 // pred_check_branch
        %631 = sbr.rel (%p629) target = $region44
      $region43: #{resnet_block_forward.1} parent=39 // pred_region
        _
      $region44: #{resnet_block_forward.1} parent=39 // pred_fallthru
        _
    $region40: #{resnet_block_forward.1} parent=5 // pred_fallthru
      _
    %p632 = scmp.le.s32.totalorder 2, %s11
    // Predicated region
    $region45: #{resnet_block_forward.1} parent=5 // pred_check
      %p633 = pneg %p632
    $region46: #{resnet_block_forward.1} parent=5 // pred_check_branch
      %635 = sbr.rel (%p633) target = $region48
    $region47: #{resnet_block_forward.1} parent=5 // pred_region
      %s636 = ssub.s32 %s11, 2
      // Predicated region
      $region49: #{resnet_block_forward.1} parent=47 // pred_check
        %p637 = pneg %p150
      $region50: #{resnet_block_forward.1} parent=47 // pred_check_branch
        %639 = sbr.rel (%p637) target = $region52
      $region51: #{resnet_block_forward.1} parent=47 // pred_region
        %p640 = scmp.lt.s32.totalorder %s17, 1
        %s641 = scalar_select %p640, %s17, 1
        %s642 = smul.addr %s641, 8
        %s643 = scalar_lea.vmem %s5, %s642
      $region52: #{resnet_block_forward.1} parent=47 // pred_fallthru
        _
    $region48: #{resnet_block_forward.1} parent=5 // pred_fallthru
      _
  $region6: #{resnet_block_forward.1} parent=0 // loop_footer
    %s15 = sadd.s32 1, %s11
  $region7: #{resnet_block_forward.1} parent=0 // loop_footer_branch
    %10 = sbr.rel target = $region3
  $region8: #{resnet_block_forward.1} parent=0 // loop_exit
    _

</llo_original>
